<compile_context>
chip_gen: v6e
topology: v6e:2x2x1
jax: 0.10.0
libtpu: 0.0.40
codegen_flags: <defaults>
</compile_context>

<pallas_src>
import jax
import jax.numpy as jnp
from jax.experimental import pallas as pl
from jax.experimental.pallas import tpu as pltpu


# Output row (j*2 + i) of the flat (6, 4) result comes from input row (i*3 + j)
# of the flat (6, 4) input:  out[j, i, :] = f(x[i, j, :]).
_ROW_PERM = (0, 3, 1, 4, 2, 5)


def _fused_sin_tanh_tanh_permute_kernel(x_ref, o_ref):
    """x_ref: (6, 4) f32 (rows in (i, j) order) -> o_ref: (6, 4) f32 (rows in (j, i) order).

    One vreg of elementwise sin -> tanh -> tanh (3 EUP pushes), then the
    reshape(2,3,-1).permute(1,0,2) is a static sublane permutation assembled
    in-register (static slices + concatenate) and written with a single
    unmasked store.
    """
    v = jnp.tanh(jnp.tanh(jnp.sin(x_ref[...])))                    # (6, 4)
    o_ref[...] = jnp.concatenate([v[r:r + 1, :] for r in _ROW_PERM], axis=0)


@jax.jit
def model_forward(x):
    """x: (2, 3, 4) float32  ->  (3, 2, 4) float32."""
    # Contiguous (free) flatten: row r = i*3 + j holds x[i, j, :].
    x2 = x.reshape(6, 4)

    out2 = pl.pallas_call(
        _fused_sin_tanh_tanh_permute_kernel,
        out_shape=jax.ShapeDtypeStruct((6, 4), x.dtype),
        # No grid: single full-array block resident in VMEM.
        in_specs=[pl.BlockSpec(memory_space=pltpu.MemorySpace.VMEM)],
        out_specs=pl.BlockSpec(memory_space=pltpu.MemorySpace.VMEM),
    )(x2)

    # Contiguous (free) reshape to the logical (3, 2, 4) result:
    # row r' = j*2 + i  ->  out[j, i, :].
    return out2.reshape(3, 2, 4)


if __name__ == "__main__":
    key = jax.random.PRNGKey(0)
    x = jax.random.normal(key, (2, 3, 4), dtype=jnp.float32)

    out = jax.block_until_ready(model_forward(x))

    # Pure-JAX reference of the traced PyTorch semantics.
    ref = jnp.transpose(
        jnp.tanh(jnp.tanh(jnp.sin(x.reshape(2, -1)))).reshape(2, 3, -1),
        (1, 0, 2),
    )
    assert out.shape == (3, 2, 4), out.shape
    assert jnp.allclose(out, ref, atol=1e-5, rtol=1e-5), "mismatch vs reference"

    print("KERNEL_OK")
</pallas_src>

<mosaic_0001>
module attributes {stable_mosaic.version = 11 : i64} {
  func.func @_fused_sin_tanh_tanh_permute_kernel(%arg0: memref<6x4xf32, #tpu.memory_space<vmem>>, %arg1: memref<6x4xf32, #tpu.memory_space<vmem>>) attributes {dimension_semantics = [], scalar_prefetch = 0 : i64, scratch_operands = 0 : i64, tpu.core_type = #tpu.core_type<tc>} {
    %c0 = arith.constant 0 : index
    %c0_0 = arith.constant 0 : index
    %0 = vector.load %arg0[%c0, %c0_0] : memref<6x4xf32, #tpu.memory_space<vmem>>, vector<6x4xf32>
    %1 = math.sin %0 : vector<6x4xf32>
    %2 = math.tanh %1 : vector<6x4xf32>
    %3 = math.tanh %2 : vector<6x4xf32>
    %4 = vector.extract_strided_slice %3 {offsets = [0, 0], sizes = [1, 4], strides = [1, 1]} : vector<6x4xf32> to vector<1x4xf32>
    %5 = vector.extract_strided_slice %3 {offsets = [3, 0], sizes = [1, 4], strides = [1, 1]} : vector<6x4xf32> to vector<1x4xf32>
    %6 = vector.extract_strided_slice %3 {offsets = [1, 0], sizes = [1, 4], strides = [1, 1]} : vector<6x4xf32> to vector<1x4xf32>
    %7 = vector.extract_strided_slice %3 {offsets = [4, 0], sizes = [1, 4], strides = [1, 1]} : vector<6x4xf32> to vector<1x4xf32>
    %8 = vector.extract_strided_slice %3 {offsets = [2, 0], sizes = [1, 4], strides = [1, 1]} : vector<6x4xf32> to vector<1x4xf32>
    %9 = vector.extract_strided_slice %3 {offsets = [5, 0], sizes = [1, 4], strides = [1, 1]} : vector<6x4xf32> to vector<1x4xf32>
    %10 = tpu.concatenate %4, %5, %6, %7, %8, %9 in 0 : vector<1x4xf32>, vector<1x4xf32>, vector<1x4xf32>, vector<1x4xf32>, vector<1x4xf32>, vector<1x4xf32> -> vector<6x4xf32>
    %c0_1 = arith.constant 0 : index
    %c0_2 = arith.constant 0 : index
    %11 = vector.load %arg1[%c0_1, %c0_2] : memref<6x4xf32, #tpu.memory_space<vmem>>, vector<6x4xf32>
    tpu.vector_store %arg1[%c0_1, %c0_2], %10 {strides = array<i32>} : memref<6x4xf32, #tpu.memory_space<vmem>>, vector<6x4xf32>,
    return
  }
}

</mosaic_0001>

<llo_original>
// kernel: model_forward.1
$region0: #{model_forward.1}
  #allocation0 [shape = 'u32[]', space=smem, size = 0x4, offset = 0x4, fixed_abs, tag = 'smem constant byte address 0x4 - core index']
  #allocation1 [shape = 'u32[144,128]{1,0:T(1,128)}', space=vmem, size = 0x12000, scoped, tag = 'internal scratch']
  %s0 = inlined_call_operand.vmem [shape: f32[6,4], index: 0, kind: input, shape index: {}]
  %s1 = inlined_call_operand.vmem [shape: f32[6,4], index: 1, kind: output, shape index: {}]
  %s2 = sld [smem:[#allocation0]]
  $region14: #{model_forward.1} parent=0
    _
  %s4 = ssub.s32 1, %s2
  %s5 = scalar_select 0, %s4, %s2
  // Predicated region
  $region2: #{model_forward.1} parent=0 // pred_check
    _
  $region3: #{model_forward.1} parent=0 // pred_check_branch
    %7 = sbr.rel (0) target = $region5
  $region4: #{model_forward.1} parent=0 // pred_region
    _
  $region5: #{model_forward.1} parent=0 // pred_fallthru
    _
  %v8 = vld [vmem:[%s0] sm:$0x3f]
  %v9 = vand.u32 2147483647, %v8
  %vm10 = vcmp.le.f32.partialorder %v9, 0.7853982
  %vm11 = vcmp.lt.s32.totalorder %v8, 0
  %v12 = vand.u32 %v8, 2139095040
  %v13 = vshrl.u32 %v12, 23
  %v14 = vsub.s32 %v13, 127
  %v15 = vand.u32 2147483647, %v8
  %v16 = vand.u32 %v15, 8388607
  %v17 = vor.u32 %v16, 8388608
  %v18 = vsub.s32 0, %v17
  %v19 = vadd.s32 %v14, 1
  %vm20 = vcmp.gt.s32.totalorder %v19, 0
  %v21 = vsel %vm20, %v19, 0
  %v22 = vshrl.u32 %v21, 5
  %v23 = vand.u32 %v21, 31
  %v24 = vsub.s32 32, %v23
  %v25 = vshrl.u32 683565275, %v24
  %v26 = vshll.u32 683565275, %v23
  %v27 = vshrl.u32 2475754826, %v24
  %v28 = vor.u32 %v26, %v27
  %v29 = vshll.u32 2475754826, %v23
  %v30 = vshrl.u32 2131351028, %v24
  %v31 = vor.u32 %v29, %v30
  %v32 = vshll.u32 2131351028, %v23
  %v33 = vshrl.u32 2102212464, %v24
  %v34 = vor.u32 %v32, %v33
  %v35 = vshll.u32 2102212464, %v23
  %v36 = vshrl.u32 920167782, %v24
  %v37 = vor.u32 %v35, %v36
  %v38 = vshll.u32 920167782, %v23
  %v39 = vshrl.u32 1326507024, %v24
  %v40 = vor.u32 %v38, %v39
  %vm41 = vcmp.lt.s32.totalorder %v22, 1
  %vm42 = vcmp.lt.s32.totalorder %v22, 2
  %vm43 = vcmp.lt.s32.totalorder %v22, 3
  %vm44 = vcmp.lt.s32.totalorder %v22, 4
  %v45 = vsel %vm41, %v25, %v28
  %v46 = vsel %vm44, %v34, 2102212464
  %v47 = vsel %vm43, %v31, %v46
  %v48 = vsel %vm42, %v45, %v47
  %v49 = vsel %vm41, %v28, %v31
  %v50 = vsel %vm44, %v37, 920167782
  %v51 = vsel %vm43, %v34, %v50
  %v52 = vsel %vm42, %v49, %v51
  %v53 = vsel %vm41, %v31, %v34
  %v54 = vsel %vm44, %v40, 1326507024
  %v55 = vsel %vm43, %v37, %v54
  %v56 = vsel %vm42, %v53, %v55
  %v57 = vshll.u32 %v17, 8
  %v58 = vmul.u32.u64.compose %v57, %v56
  %v59 = vextract.low.u32 %v58
  %v60 = vextract.high.u32 %v58
  %v61 = vmul.u32.u64.compose %v57, %v52
  %v62 = vextract.low.u32 %v61
  %v63 = vextract.high.u32 %v61
  %v64 = vmul.u32 %v57, %v48
  %v65 = vadd.s32 %v60, %v62
  %vm66 = vc.u32 %v60, %v62
  %v67 = vadd.s32 %v63, 1
  %v68 = vsel %vm66, %v67, %v63
  %v69 = vadd.s32 %v64, %v68
  %v70 = vadd.s32 %v69, 536870912
  %v71 = vshrl.u32 %v70, 30
  %v72 = vshll.u32 %v71, 30
  %v73 = vsub.s32 %v69, %v72
  %vm74 = vcmp.lt.s32.totalorder %v73, 0
  %v75 = vsub.s32 0, %v73
  %v76 = vsel %vm74, %v75, %v73
  %v77 = vclz %v76
  %v78 = vsub.s32 %v77, 2
  %vm79 = vcmp.gt.s32.totalorder 0, %v78
  %v80 = vsel %vm79, 0, %v78
  %v81 = vsub.s32 32, %v80
  %v82 = vshll.u32 %v73, %v80
  %v83 = vshrl.u32 %v65, %v81
  %v84 = vor.u32 %v82, %v83
  %v85 = vsub.s32 4294967266, %v80
  %v86 = vadd.s32 %v85, 127
  %v87 = vshll.u32 %v86, 23
  %v88 = vor.u32 4788187, %v87
  %v89 = vand.u32 2147483647, %v88
  %v91 = vcvt.s32.f32 %v84
  %v92 = vmul.f32 %v91, %v89
  %v93 = vxor.u32 %v92, 2147483648
  %v94 = vsel %vm11, %v93, %v92
  %v95 = vsub.s32 4, %v71
  %v96 = vsel %vm11, %v95, %v71
  %v97 = vsel %vm10, %v8, %v94
  %v98 = vsel %vm10, 0, %v96
  %v99 = vcosq.f32.pop %v97
  %v100 = vsinq.f32.pop %v97
  %vm101 = vweird.f32 %v8
  %v102 = vadd.s32 %v98, 3
  %v103 = vand.u32 %v102, 3
  %vm104 = vcmp.lt.s32.totalorder %v103, 2
  %vm105 = vcmp.eq.s32.totalorder %v103, 0
  %v106 = vxor.u32 %v100, 2147483648
  %v107 = vsel %vm105, %v99, %v106
  %vm108 = vcmp.eq.s32.totalorder %v103, 2
  %v109 = vxor.u32 %v99, 2147483648
  %v110 = vsel %vm108, %v109, %v100
  %v111 = vsel %vm104, %v107, %v110
  %v112 = vsel %vm101, nan, %v111
  %v113 = vtanh.pop %v112
  %v114 = vtanh.pop %v113
  %v116 = vrot.slane %v114, 2
  %v118 = vrot.slane %v114, 7
  %v120 = vrot.slane %v114, 1
  %v122 = vrot.slane %v114, 6
  %vm124 = vcmask 1040384
  %v125 = vsel %vm124, %v114, %v116
  %vm126 = vcmask 1041408
  %v127 = vsel %vm126, %v125, %v118
  %vm128 = vcmask 1042432
  %v129 = vsel %vm128, %v127, %v120
  %vm130 = vcmask 1043456
  %v131 = vsel %vm130, %v129, %v122
  %vm132 = vcmask 1044480
  %v133 = vsel %vm132, %v131, %v114
  %vm134 = vcmask 29696
  %135 = vst.msk [vmem:[%s1] sm:$0x3f] %vm134, %v133
  // Predicated region
  $region6: #{model_forward.1} parent=0 // pred_check
    _
  $region7: #{model_forward.1} parent=0 // pred_check_branch
    %137 = sbr.rel (0) target = $region9
  $region8: #{model_forward.1} parent=0 // pred_region
    _
  $region9: #{model_forward.1} parent=0 // pred_fallthru
    _
  // Predicated region
  $region10: #{model_forward.1} parent=0 // pred_check
    _
  $region11: #{model_forward.1} parent=0 // pred_check_branch
    %139 = sbr.rel (0) target = $region13
  $region12: #{model_forward.1} parent=0 // pred_region
    _
  $region13: #{model_forward.1} parent=0 // pred_fallthru
    _

</llo_original>
